<compile_context>
chip_gen: v7x
topology: tpu7x:2x2x1
jax: 0.10.0
libtpu: 0.0.40
codegen_flags: <defaults>
</compile_context>

<pallas_src>
import math

import jax
import jax.numpy as jnp
from jax.experimental import pallas as pl
from jax.experimental.pallas import tpu as pltpu

FEATURE_DIM = 20
SEQ_LEN = 5
HEAD_HID = 20
HEAD_OUT = 4
NUM_HEADS = 5
HID_ALL = NUM_HEADS * HEAD_HID      # 100
OUT_ALL = NUM_HEADS * HEAD_OUT      # 20

# 128-lane-aligned segment offsets inside the single packed parameter slab.
SEG = 128
OFF_BASE = 0 * SEG   # base linear weight (F, F)      rows 0..F-1
OFF_WI = 1 * SEG     # fused GRU input  weights (F, 3F) [r|z|n]
OFF_WH = 2 * SEG     # fused GRU hidden weights (F, 3F) [r|z|n]
OFF_W1H = 3 * SEG    # fused fc1, h-part  (F, 100)
OFF_W1X = 4 * SEG    # fused fc1, x4-part (F, 100)
OFF_W2 = 5 * SEG     # block-diagonal fused fc2 (100, 128) lane-padded, rows 0..99
OFF_B2 = 6 * SEG     # fc2 bias, lane-padded to 128 (bias row only)
SLAB_LANES = 7 * SEG  # 896
SLAB_ROWS = HID_ALL   # 100
BIAS_ROW = 24         # 8-sublane aligned; free in every segment except OFF_W2


def mindgru_kernel(xt_ref, slab_ref, out_ref):
    """Whole MindGRU forward for one (small) padded batch, fully VMEM-resident.

    xt_ref  : (S*Bp, F) raw time-major flattened input rows (row = t*Bp + b)
    slab_ref: (100, 896) single packed parameter slab (see offsets above)
    out_ref : (Bp, 128)  lane-padded output; cols [0:20) = 5 heads x 4 outputs
    """
    F = FEATURE_DIM
    S = SEQ_LEN
    Bp = out_ref.shape[0]            # padded batch, multiple of 8

    xt = xt_ref[...]                             # (S*Bp, F) raw rows
    x4 = xt[(S - 1) * Bp:S * Bp, :]              # raw input[:, 4, :] (8-aligned slice)

    # Static, 128-lane-aligned views into the single packed slab (1 DMA total).
    bw = slab_ref[0:F, OFF_BASE:OFF_BASE + F]              # (F, F)
    w_i = slab_ref[0:F, OFF_WI:OFF_WI + 3 * F]             # (F, 3F)
    w_h = slab_ref[0:F, OFF_WH:OFF_WH + 3 * F]             # (F, 3F)
    w1h = slab_ref[0:F, OFF_W1H:OFF_W1H + HID_ALL]         # (F, 100)
    w1x = slab_ref[0:F, OFF_W1X:OFF_W1X + HID_ALL]         # (F, 100)
    w2 = slab_ref[0:HID_ALL, OFF_W2:OFF_W2 + SEG]          # (100, 128) lane-padded

    bb = slab_ref[BIAS_ROW:BIAS_ROW + 1, OFF_BASE:OFF_BASE + F]      # (1, F)
    b_i = slab_ref[BIAS_ROW:BIAS_ROW + 1, OFF_WI:OFF_WI + 3 * F]     # (1, 3F) b_hr/b_hz folded
    b_hn = slab_ref[BIAS_ROW:BIAS_ROW + 1, OFF_WH:OFF_WH + F]        # (1, F)
    b1 = slab_ref[BIAS_ROW:BIAS_ROW + 1, OFF_W1H:OFF_W1H + HID_ALL]  # (1, 100)
    b2 = slab_ref[BIAS_ROW:BIAS_ROW + 1, OFF_B2:OFF_B2 + SEG]        # (1, 128) lane-padded

    # base_model: Linear(F, F) on every (t, b) row, then ReLU.
    base = jnp.dot(xt, bw, preferred_element_type=jnp.float32) + bb
    base = jnp.maximum(base, 0.0)                                    # (S*Bp, F)

    # Hoisted input-side GRU projections for ALL timesteps at once:
    # gi_all[:, 0:F]=r, [F:2F]=z, [2F:3F]=n  (b_hr, b_hz already folded in).
    gi_all = jnp.dot(base, w_i, preferred_element_type=jnp.float32) + b_i  # (S*Bp, 3F)

    # GRU recurrence (PyTorch gate math [r, z, n]), h0 = 0.
    # One fused hidden-side matmul + one fused sigmoid per step.
    h = jnp.zeros((Bp, F), jnp.float32)
    for t in range(S):  # S = 5, static unroll (true serial dependency)
        gi = gi_all[t * Bp:(t + 1) * Bp, :]                               # 8-aligned slice
        gh = jnp.dot(h, w_h, preferred_element_type=jnp.float32)         # (Bp, 3F), no bias
        rz = jax.nn.sigmoid(gi[:, 0:2 * F] + gh[:, 0:2 * F])             # fused r|z
        r = rz[:, 0:F]
        z = rz[:, F:2 * F]
        n = jnp.tanh(gi[:, 2 * F:3 * F] + r * (gh[:, 2 * F:3 * F] + b_hn))
        h = (1.0 - z) * n + z * h

    # Concat([gru_out[:,4,:], input[:,4,:]]) realized by split fc1 weights.
    # Five heads' fc1 stacked (100-wide); fc2 block-diagonal, lane-padded to 128.
    hid = (jnp.dot(h, w1h, preferred_element_type=jnp.float32)
           + jnp.dot(x4, w1x, preferred_element_type=jnp.float32)
           + b1)
    hid = jnp.maximum(hid, 0.0)                                           # (Bp, 100)
    out = jnp.dot(hid, w2, preferred_element_type=jnp.float32) + b2       # (Bp, 128)
    out_ref[...] = out.astype(out_ref.dtype)                              # lane-dense store


# ----------------------------------------------------------------------------
# Parameter init (deterministic, PyTorch-style uniform(-1/sqrt(fan_in), ...)).
# ----------------------------------------------------------------------------
def _linear_init(key, out_dim, in_dim):
    bound = 1.0 / math.sqrt(in_dim)
    kw, kb = jax.random.split(key)
    W = jax.random.uniform(kw, (out_dim, in_dim), jnp.float32, -bound, bound)
    b = jax.random.uniform(kb, (out_dim,), jnp.float32, -bound, bound)
    return W, b


def init_params(key):
    F = FEATURE_DIM
    keys = jax.random.split(key, 16)
    p = {}
    p["base_W"], p["base_b"] = _linear_init(keys[0], F, F)

    # GRU params: weight_ih_l0 (3F, F), weight_hh_l0 (3F, F), biases (3F,)
    bound = 1.0 / math.sqrt(F)
    p["w_ih"] = jax.random.uniform(keys[1], (3 * F, F), jnp.float32, -bound, bound)
    p["w_hh"] = jax.random.uniform(keys[2], (3 * F, F), jnp.float32, -bound, bound)
    p["b_ih"] = jax.random.uniform(keys[3], (3 * F,), jnp.float32, -bound, bound)
    p["b_hh"] = jax.random.uniform(keys[4], (3 * F,), jnp.float32, -bound, bound)

    fc1, fc2 = [], []
    for i in range(NUM_HEADS):
        fc1.append(_linear_init(keys[5 + i], HEAD_HID, 2 * F))
        fc2.append(_linear_init(keys[10 + i], HEAD_OUT, HEAD_HID))
    p["fc1"] = fc1
    p["fc2"] = fc2
    return p


def pack_kernel_args(p):
    """One-time host-side packing: single parameter slab -> single DMA."""
    F = FEATURE_DIM
    slab = jnp.zeros((SLAB_ROWS, SLAB_LANES), jnp.float32)

    # --- weights (rows 0..F-1 of each 128-lane segment) ----------------------
    slab = slab.at[0:F, OFF_BASE:OFF_BASE + F].set(p["base_W"].T)
    slab = slab.at[0:F, OFF_WI:OFF_WI + 3 * F].set(p["w_ih"].T)      # cols [r|z|n]
    slab = slab.at[0:F, OFF_WH:OFF_WH + 3 * F].set(p["w_hh"].T)
    w1_all = jnp.concatenate([W.T for (W, _) in p["fc1"]], axis=1)   # (2F, 100)
    slab = slab.at[0:F, OFF_W1H:OFF_W1H + HID_ALL].set(w1_all[:F, :])   # gru_out part
    slab = slab.at[0:F, OFF_W1X:OFF_W1X + HID_ALL].set(w1_all[F:, :])   # input[:,4,:] part

    # --- block-diagonal fused fc2, lane-padded to 128 output cols ------------
    for i, (W, _) in enumerate(p["fc2"]):
        slab = slab.at[i * HEAD_HID:(i + 1) * HEAD_HID,
                       OFF_W2 + i * HEAD_OUT:OFF_W2 + (i + 1) * HEAD_OUT].set(W.T)

    # --- biases, single 8-sublane-aligned row ---------------------------------
    # Fold b_hr, b_hz into b_ir, b_iz (valid: r,z = sigmoid(gi+gh)); keep b_hn.
    b_ih, b_hh = p["b_ih"], p["b_hh"]
    b_i_folded = jnp.concatenate([b_ih[:2 * F] + b_hh[:2 * F], b_ih[2 * F:]])
    slab = slab.at[BIAS_ROW, OFF_BASE:OFF_BASE + F].set(p["base_b"])
    slab = slab.at[BIAS_ROW, OFF_WI:OFF_WI + 3 * F].set(b_i_folded)
    slab = slab.at[BIAS_ROW, OFF_WH:OFF_WH + F].set(b_hh[2 * F:])
    slab = slab.at[BIAS_ROW, OFF_W1H:OFF_W1H + HID_ALL].set(
        jnp.concatenate([b for (_, b) in p["fc1"]]))
    slab = slab.at[BIAS_ROW, OFF_B2:OFF_B2 + OUT_ALL].set(
        jnp.concatenate([b for (_, b) in p["fc2"]]))
    return slab


@jax.jit
def mindgru_forward(x, slab):
    B, S, F = x.shape
    # Pad batch to a multiple of 8 so per-step slices are sublane-aligned.
    Bp = max(8, -(-B // 8) * 8)
    if Bp != B:
        x = jnp.pad(x, ((0, Bp - B), (0, 0), (0, 0)))
    # Layout plumbing in the wrapper (free in XLA): time-major flatten of RAW rows.
    xt = jnp.transpose(x, (1, 0, 2)).reshape(S * Bp, F)   # row = t*Bp + b

    out = pl.pallas_call(
        mindgru_kernel,
        out_shape=jax.ShapeDtypeStruct((Bp, SEG), jnp.float32),  # lane-dense output
        in_specs=[pl.BlockSpec(memory_space=pltpu.MemorySpace.VMEM),
                  pl.BlockSpec(memory_space=pltpu.MemorySpace.VMEM)],
        out_specs=pl.BlockSpec(memory_space=pltpu.MemorySpace.VMEM),
    )(xt, slab)

    out = out[:B, :OUT_ALL]
    # TODO(synk): for large B (esp. v7x's 2 TensorCores) add a 1-D batch grid
    # (512-1024 rows/block, dimension_semantics=("parallel",)) and/or flip to a
    # batch-as-lanes (F, B_tile) layout; at tiny B the call is fixed-overhead.
    return tuple(out[:, i * HEAD_OUT:(i + 1) * HEAD_OUT] for i in range(NUM_HEADS))


# ----------------------------------------------------------------------------
# Pure-JAX reference (same math) for a correctness check.
# ----------------------------------------------------------------------------
def mindgru_reference(x, p):
    F = FEATURE_DIM
    B, S, _ = x.shape
    base = jnp.maximum(x.reshape(-1, F) @ p["base_W"].T + p["base_b"], 0.0)
    base = base.reshape(B, S, F)
    h = jnp.zeros((B, F), jnp.float32)
    for t in range(S):
        xt = base[:, t, :]
        gi = xt @ p["w_ih"].T + p["b_ih"]
        gh = h @ p["w_hh"].T + p["b_hh"]
        r = jax.nn.sigmoid(gi[:, :F] + gh[:, :F])
        z = jax.nn.sigmoid(gi[:, F:2 * F] + gh[:, F:2 * F])
        n = jnp.tanh(gi[:, 2 * F:] + r * gh[:, 2 * F:])
        h = (1.0 - z) * n + z * h
    cat = jnp.concatenate([h, x[:, 4, :]], axis=1)
    outs = []
    for i in range(NUM_HEADS):
        W1, b1 = p["fc1"][i]
        W2, b2 = p["fc2"][i]
        hid = jnp.maximum(cat @ W1.T + b1, 0.0)
        outs.append(hid @ W2.T + b2)
    return tuple(outs)


if __name__ == "__main__":
    key = jax.random.PRNGKey(0)
    kx, kp = jax.random.split(key)
    B = 2
    x = jax.random.normal(kx, (B, SEQ_LEN, FEATURE_DIM), jnp.float32)
    params = init_params(kp)

    # One-time parameter packing (not on the per-call path).
    slab = jax.block_until_ready(pack_kernel_args(params))

    outs = mindgru_forward(x, slab)
    outs = jax.block_until_ready(outs)

    refs = mindgru_reference(x, params)
    for o, r in zip(outs, refs):
        assert o.shape == (B, HEAD_OUT)
        assert jnp.allclose(o, r, atol=1e-4, rtol=1e-4), (o, r)

    print("KERNEL_OK")
</pallas_src>

<mosaic_0001>
module attributes {stable_mosaic.version = 11 : i64} {
  func.func @mindgru_kernel(%arg0: memref<40x20xf32, #tpu.memory_space<vmem>>, %arg1: memref<100x896xf32, #tpu.memory_space<vmem>>, %arg2: memref<8x128xf32, #tpu.memory_space<vmem>>) attributes {dimension_semantics = [], scalar_prefetch = 0 : i64, scratch_operands = 0 : i64, tpu.core_type = #tpu.core_type<tc>} {
    %c0 = arith.constant 0 : index
    %c0_0 = arith.constant 0 : index
    %0 = vector.load %arg0[%c0, %c0_0] : memref<40x20xf32, #tpu.memory_space<vmem>>, vector<40x20xf32>
    %1 = vector.extract_strided_slice %0 {offsets = [32, 0], sizes = [8, 20], strides = [1, 1]} : vector<40x20xf32> to vector<8x20xf32>
    %c0_1 = arith.constant 0 : index
    %c0_2 = arith.constant 0 : index
    %2 = vector.load %arg1[%c0_1, %c0_2] : memref<100x896xf32, #tpu.memory_space<vmem>>, vector<20x20xf32>
    %c0_3 = arith.constant 0 : index
    %c128 = arith.constant 128 : index
    %3 = vector.load %arg1[%c0_3, %c128] : memref<100x896xf32, #tpu.memory_space<vmem>>, vector<20x60xf32>
    %c0_4 = arith.constant 0 : index
    %c256 = arith.constant 256 : index
    %4 = vector.load %arg1[%c0_4, %c256] : memref<100x896xf32, #tpu.memory_space<vmem>>, vector<20x60xf32>
    %c0_5 = arith.constant 0 : index
    %c384 = arith.constant 384 : index
    %5 = vector.load %arg1[%c0_5, %c384] : memref<100x896xf32, #tpu.memory_space<vmem>>, vector<20x100xf32>
    %c0_6 = arith.constant 0 : index
    %c512 = arith.constant 512 : index
    %6 = vector.load %arg1[%c0_6, %c512] : memref<100x896xf32, #tpu.memory_space<vmem>>, vector<20x100xf32>
    %c0_7 = arith.constant 0 : index
    %c640 = arith.constant 640 : index
    %7 = vector.load %arg1[%c0_7, %c640] : memref<100x896xf32, #tpu.memory_space<vmem>>, vector<100x128xf32>
    %c24 = arith.constant 24 : index
    %c0_8 = arith.constant 0 : index
    %8 = vector.load %arg1[%c24, %c0_8] : memref<100x896xf32, #tpu.memory_space<vmem>>, vector<1x20xf32>
    %c24_9 = arith.constant 24 : index
    %c128_10 = arith.constant 128 : index
    %9 = vector.load %arg1[%c24_9, %c128_10] : memref<100x896xf32, #tpu.memory_space<vmem>>, vector<1x60xf32>
    %c24_11 = arith.constant 24 : index
    %c256_12 = arith.constant 256 : index
    %10 = vector.load %arg1[%c24_11, %c256_12] : memref<100x896xf32, #tpu.memory_space<vmem>>, vector<1x20xf32>
    %c24_13 = arith.constant 24 : index
    %c384_14 = arith.constant 384 : index
    %11 = vector.load %arg1[%c24_13, %c384_14] : memref<100x896xf32, #tpu.memory_space<vmem>>, vector<1x100xf32>
    %c24_15 = arith.constant 24 : index
    %c768 = arith.constant 768 : index
    %12 = vector.load %arg1[%c24_15, %c768] : memref<100x896xf32, #tpu.memory_space<vmem>>, vector<1x128xf32>
    %cst = arith.constant dense<0.000000e+00> : vector<40x20xf32>
    %13 = tpu.matmul %0, %2, %cst {dimension_numbers = #tpu.dot_dimension_numbers<[1], [0], [0], [1], [0, 0, 1, 1], [], []>} : vector<40x20xf32>, vector<20x20xf32>, vector<40x20xf32> -> vector<40x20xf32>
    %14 = vector.broadcast %8 : vector<1x20xf32> to vector<40x20xf32>
    %15 = arith.addf %13, %14 : vector<40x20xf32>
    %cst_16 = arith.constant 0.000000e+00 : f32
    %16 = vector.broadcast %cst_16 : f32 to vector<40x20xf32>
    %17 = arith.maximumf %15, %16 : vector<40x20xf32>
    %cst_17 = arith.constant dense<0.000000e+00> : vector<40x60xf32>
    %18 = tpu.matmul %17, %3, %cst_17 {dimension_numbers = #tpu.dot_dimension_numbers<[1], [0], [0], [1], [0, 0, 1, 1], [], []>} : vector<40x20xf32>, vector<20x60xf32>, vector<40x60xf32> -> vector<40x60xf32>
    %19 = vector.broadcast %9 : vector<1x60xf32> to vector<40x60xf32>
    %20 = arith.addf %18, %19 : vector<40x60xf32>
    %cst_18 = arith.constant 0.000000e+00 : f32
    %21 = vector.broadcast %cst_18 : f32 to vector<8x20xf32>
    %22 = vector.extract_strided_slice %20 {offsets = [0, 0], sizes = [8, 60], strides = [1, 1]} : vector<40x60xf32> to vector<8x60xf32>
    %cst_19 = arith.constant dense<0.000000e+00> : vector<8x60xf32>
    %23 = tpu.matmul %21, %4, %cst_19 {dimension_numbers = #tpu.dot_dimension_numbers<[1], [0], [0], [1], [0, 0, 1, 1], [], []>} : vector<8x20xf32>, vector<20x60xf32>, vector<8x60xf32> -> vector<8x60xf32>
    %24 = vector.extract_strided_slice %22 {offsets = [0, 0], sizes = [8, 40], strides = [1, 1]} : vector<8x60xf32> to vector<8x40xf32>
    %25 = vector.extract_strided_slice %23 {offsets = [0, 0], sizes = [8, 40], strides = [1, 1]} : vector<8x60xf32> to vector<8x40xf32>
    %26 = arith.addf %24, %25 : vector<8x40xf32>
    %27 = arith.negf %26 : vector<8x40xf32>
    %28 = math.exp %27 : vector<8x40xf32>
    %cst_20 = arith.constant 1.000000e+00 : f32
    %29 = vector.broadcast %cst_20 : f32 to vector<8x40xf32>
    %30 = arith.addf %29, %28 : vector<8x40xf32>
    %31 = arith.divf %29, %30 : vector<8x40xf32>
    %32 = vector.extract_strided_slice %31 {offsets = [0, 0], sizes = [8, 20], strides = [1, 1]} : vector<8x40xf32> to vector<8x20xf32>
    %33 = vector.extract_strided_slice %31 {offsets = [0, 20], sizes = [8, 20], strides = [1, 1]} : vector<8x40xf32> to vector<8x20xf32>
    %34 = vector.extract_strided_slice %22 {offsets = [0, 40], sizes = [8, 20], strides = [1, 1]} : vector<8x60xf32> to vector<8x20xf32>
    %35 = vector.extract_strided_slice %23 {offsets = [0, 40], sizes = [8, 20], strides = [1, 1]} : vector<8x60xf32> to vector<8x20xf32>
    %36 = vector.broadcast %10 : vector<1x20xf32> to vector<8x20xf32>
    %37 = arith.addf %35, %36 : vector<8x20xf32>
    %38 = arith.mulf %32, %37 : vector<8x20xf32>
    %39 = arith.addf %34, %38 : vector<8x20xf32>
    %40 = math.tanh %39 : vector<8x20xf32>
    %cst_21 = arith.constant 1.000000e+00 : f32
    %41 = vector.broadcast %cst_21 : f32 to vector<8x20xf32>
    %42 = arith.subf %41, %33 : vector<8x20xf32>
    %43 = arith.mulf %42, %40 : vector<8x20xf32>
    %44 = arith.mulf %33, %21 : vector<8x20xf32>
    %45 = arith.addf %43, %44 : vector<8x20xf32>
    %46 = vector.extract_strided_slice %20 {offsets = [8, 0], sizes = [8, 60], strides = [1, 1]} : vector<40x60xf32> to vector<8x60xf32>
    %cst_22 = arith.constant dense<0.000000e+00> : vector<8x60xf32>
    %47 = tpu.matmul %45, %4, %cst_22 {dimension_numbers = #tpu.dot_dimension_numbers<[1], [0], [0], [1], [0, 0, 1, 1], [], []>} : vector<8x20xf32>, vector<20x60xf32>, vector<8x60xf32> -> vector<8x60xf32>
    %48 = vector.extract_strided_slice %46 {offsets = [0, 0], sizes = [8, 40], strides = [1, 1]} : vector<8x60xf32> to vector<8x40xf32>
    %49 = vector.extract_strided_slice %47 {offsets = [0, 0], sizes = [8, 40], strides = [1, 1]} : vector<8x60xf32> to vector<8x40xf32>
    %50 = arith.addf %48, %49 : vector<8x40xf32>
    %51 = arith.negf %50 : vector<8x40xf32>
    %52 = math.exp %51 : vector<8x40xf32>
    %cst_23 = arith.constant 1.000000e+00 : f32
    %53 = vector.broadcast %cst_23 : f32 to vector<8x40xf32>
    %54 = arith.addf %53, %52 : vector<8x40xf32>
    %55 = arith.divf %53, %54 : vector<8x40xf32>
    %56 = vector.extract_strided_slice %55 {offsets = [0, 0], sizes = [8, 20], strides = [1, 1]} : vector<8x40xf32> to vector<8x20xf32>
    %57 = vector.extract_strided_slice %55 {offsets = [0, 20], sizes = [8, 20], strides = [1, 1]} : vector<8x40xf32> to vector<8x20xf32>
    %58 = vector.extract_strided_slice %46 {offsets = [0, 40], sizes = [8, 20], strides = [1, 1]} : vector<8x60xf32> to vector<8x20xf32>
    %59 = vector.extract_strided_slice %47 {offsets = [0, 40], sizes = [8, 20], strides = [1, 1]} : vector<8x60xf32> to vector<8x20xf32>
    %60 = vector.broadcast %10 : vector<1x20xf32> to vector<8x20xf32>
    %61 = arith.addf %59, %60 : vector<8x20xf32>
    %62 = arith.mulf %56, %61 : vector<8x20xf32>
    %63 = arith.addf %58, %62 : vector<8x20xf32>
    %64 = math.tanh %63 : vector<8x20xf32>
    %cst_24 = arith.constant 1.000000e+00 : f32
    %65 = vector.broadcast %cst_24 : f32 to vector<8x20xf32>
    %66 = arith.subf %65, %57 : vector<8x20xf32>
    %67 = arith.mulf %66, %64 : vector<8x20xf32>
    %68 = arith.mulf %57, %45 : vector<8x20xf32>
    %69 = arith.addf %67, %68 : vector<8x20xf32>
    %70 = vector.extract_strided_slice %20 {offsets = [16, 0], sizes = [8, 60], strides = [1, 1]} : vector<40x60xf32> to vector<8x60xf32>
    %cst_25 = arith.constant dense<0.000000e+00> : vector<8x60xf32>
    %71 = tpu.matmul %69, %4, %cst_25 {dimension_numbers = #tpu.dot_dimension_numbers<[1], [0], [0], [1], [0, 0, 1, 1], [], []>} : vector<8x20xf32>, vector<20x60xf32>, vector<8x60xf32> -> vector<8x60xf32>
    %72 = vector.extract_strided_slice %70 {offsets = [0, 0], sizes = [8, 40], strides = [1, 1]} : vector<8x60xf32> to vector<8x40xf32>
    %73 = vector.extract_strided_slice %71 {offsets = [0, 0], sizes = [8, 40], strides = [1, 1]} : vector<8x60xf32> to vector<8x40xf32>
    %74 = arith.addf %72, %73 : vector<8x40xf32>
    %75 = arith.negf %74 : vector<8x40xf32>
    %76 = math.exp %75 : vector<8x40xf32>
    %cst_26 = arith.constant 1.000000e+00 : f32
    %77 = vector.broadcast %cst_26 : f32 to vector<8x40xf32>
    %78 = arith.addf %77, %76 : vector<8x40xf32>
    %79 = arith.divf %77, %78 : vector<8x40xf32>
    %80 = vector.extract_strided_slice %79 {offsets = [0, 0], sizes = [8, 20], strides = [1, 1]} : vector<8x40xf32> to vector<8x20xf32>
    %81 = vector.extract_strided_slice %79 {offsets = [0, 20], sizes = [8, 20], strides = [1, 1]} : vector<8x40xf32> to vector<8x20xf32>
    %82 = vector.extract_strided_slice %70 {offsets = [0, 40], sizes = [8, 20], strides = [1, 1]} : vector<8x60xf32> to vector<8x20xf32>
    %83 = vector.extract_strided_slice %71 {offsets = [0, 40], sizes = [8, 20], strides = [1, 1]} : vector<8x60xf32> to vector<8x20xf32>
    %84 = vector.broadcast %10 : vector<1x20xf32> to vector<8x20xf32>
    %85 = arith.addf %83, %84 : vector<8x20xf32>
    %86 = arith.mulf %80, %85 : vector<8x20xf32>
    %87 = arith.addf %82, %86 : vector<8x20xf32>
    %88 = math.tanh %87 : vector<8x20xf32>
    %cst_27 = arith.constant 1.000000e+00 : f32
    %89 = vector.broadcast %cst_27 : f32 to vector<8x20xf32>
    %90 = arith.subf %89, %81 : vector<8x20xf32>
    %91 = arith.mulf %90, %88 : vector<8x20xf32>
    %92 = arith.mulf %81, %69 : vector<8x20xf32>
    %93 = arith.addf %91, %92 : vector<8x20xf32>
    %94 = vector.extract_strided_slice %20 {offsets = [24, 0], sizes = [8, 60], strides = [1, 1]} : vector<40x60xf32> to vector<8x60xf32>
    %cst_28 = arith.constant dense<0.000000e+00> : vector<8x60xf32>
    %95 = tpu.matmul %93, %4, %cst_28 {dimension_numbers = #tpu.dot_dimension_numbers<[1], [0], [0], [1], [0, 0, 1, 1], [], []>} : vector<8x20xf32>, vector<20x60xf32>, vector<8x60xf32> -> vector<8x60xf32>
    %96 = vector.extract_strided_slice %94 {offsets = [0, 0], sizes = [8, 40], strides = [1, 1]} : vector<8x60xf32> to vector<8x40xf32>
    %97 = vector.extract_strided_slice %95 {offsets = [0, 0], sizes = [8, 40], strides = [1, 1]} : vector<8x60xf32> to vector<8x40xf32>
    %98 = arith.addf %96, %97 : vector<8x40xf32>
    %99 = arith.negf %98 : vector<8x40xf32>
    %100 = math.exp %99 : vector<8x40xf32>
    %cst_29 = arith.constant 1.000000e+00 : f32
    %101 = vector.broadcast %cst_29 : f32 to vector<8x40xf32>
    %102 = arith.addf %101, %100 : vector<8x40xf32>
    %103 = arith.divf %101, %102 : vector<8x40xf32>
    %104 = vector.extract_strided_slice %103 {offsets = [0, 0], sizes = [8, 20], strides = [1, 1]} : vector<8x40xf32> to vector<8x20xf32>
    %105 = vector.extract_strided_slice %103 {offsets = [0, 20], sizes = [8, 20], strides = [1, 1]} : vector<8x40xf32> to vector<8x20xf32>
    %106 = vector.extract_strided_slice %94 {offsets = [0, 40], sizes = [8, 20], strides = [1, 1]} : vector<8x60xf32> to vector<8x20xf32>
    %107 = vector.extract_strided_slice %95 {offsets = [0, 40], sizes = [8, 20], strides = [1, 1]} : vector<8x60xf32> to vector<8x20xf32>
    %108 = vector.broadcast %10 : vector<1x20xf32> to vector<8x20xf32>
    %109 = arith.addf %107, %108 : vector<8x20xf32>
    %110 = arith.mulf %104, %109 : vector<8x20xf32>
    %111 = arith.addf %106, %110 : vector<8x20xf32>
    %112 = math.tanh %111 : vector<8x20xf32>
    %cst_30 = arith.constant 1.000000e+00 : f32
    %113 = vector.broadcast %cst_30 : f32 to vector<8x20xf32>
    %114 = arith.subf %113, %105 : vector<8x20xf32>
    %115 = arith.mulf %114, %112 : vector<8x20xf32>
    %116 = arith.mulf %105, %93 : vector<8x20xf32>
    %117 = arith.addf %115, %116 : vector<8x20xf32>
    %118 = vector.extract_strided_slice %20 {offsets = [32, 0], sizes = [8, 60], strides = [1, 1]} : vector<40x60xf32> to vector<8x60xf32>
    %cst_31 = arith.constant dense<0.000000e+00> : vector<8x60xf32>
    %119 = tpu.matmul %117, %4, %cst_31 {dimension_numbers = #tpu.dot_dimension_numbers<[1], [0], [0], [1], [0, 0, 1, 1], [], []>} : vector<8x20xf32>, vector<20x60xf32>, vector<8x60xf32> -> vector<8x60xf32>
    %120 = vector.extract_strided_slice %118 {offsets = [0, 0], sizes = [8, 40], strides = [1, 1]} : vector<8x60xf32> to vector<8x40xf32>
    %121 = vector.extract_strided_slice %119 {offsets = [0, 0], sizes = [8, 40], strides = [1, 1]} : vector<8x60xf32> to vector<8x40xf32>
    %122 = arith.addf %120, %121 : vector<8x40xf32>
    %123 = arith.negf %122 : vector<8x40xf32>
    %124 = math.exp %123 : vector<8x40xf32>
    %cst_32 = arith.constant 1.000000e+00 : f32
    %125 = vector.broadcast %cst_32 : f32 to vector<8x40xf32>
    %126 = arith.addf %125, %124 : vector<8x40xf32>
    %127 = arith.divf %125, %126 : vector<8x40xf32>
    %128 = vector.extract_strided_slice %127 {offsets = [0, 0], sizes = [8, 20], strides = [1, 1]} : vector<8x40xf32> to vector<8x20xf32>
    %129 = vector.extract_strided_slice %127 {offsets = [0, 20], sizes = [8, 20], strides = [1, 1]} : vector<8x40xf32> to vector<8x20xf32>
    %130 = vector.extract_strided_slice %118 {offsets = [0, 40], sizes = [8, 20], strides = [1, 1]} : vector<8x60xf32> to vector<8x20xf32>
    %131 = vector.extract_strided_slice %119 {offsets = [0, 40], sizes = [8, 20], strides = [1, 1]} : vector<8x60xf32> to vector<8x20xf32>
    %132 = vector.broadcast %10 : vector<1x20xf32> to vector<8x20xf32>
    %133 = arith.addf %131, %132 : vector<8x20xf32>
    %134 = arith.mulf %128, %133 : vector<8x20xf32>
    %135 = arith.addf %130, %134 : vector<8x20xf32>
    %136 = math.tanh %135 : vector<8x20xf32>
    %cst_33 = arith.constant 1.000000e+00 : f32
    %137 = vector.broadcast %cst_33 : f32 to vector<8x20xf32>
    %138 = arith.subf %137, %129 : vector<8x20xf32>
    %139 = arith.mulf %138, %136 : vector<8x20xf32>
    %140 = arith.mulf %129, %117 : vector<8x20xf32>
    %141 = arith.addf %139, %140 : vector<8x20xf32>
    %cst_34 = arith.constant dense<0.000000e+00> : vector<8x100xf32>
    %142 = tpu.matmul %141, %5, %cst_34 {dimension_numbers = #tpu.dot_dimension_numbers<[1], [0], [0], [1], [0, 0, 1, 1], [], []>} : vector<8x20xf32>, vector<20x100xf32>, vector<8x100xf32> -> vector<8x100xf32>
    %cst_35 = arith.constant dense<0.000000e+00> : vector<8x100xf32>
    %143 = tpu.matmul %1, %6, %cst_35 {dimension_numbers = #tpu.dot_dimension_numbers<[1], [0], [0], [1], [0, 0, 1, 1], [], []>} : vector<8x20xf32>, vector<20x100xf32>, vector<8x100xf32> -> vector<8x100xf32>
    %144 = arith.addf %142, %143 : vector<8x100xf32>
    %145 = vector.broadcast %11 : vector<1x100xf32> to vector<8x100xf32>
    %146 = arith.addf %144, %145 : vector<8x100xf32>
    %cst_36 = arith.constant 0.000000e+00 : f32
    %147 = vector.broadcast %cst_36 : f32 to vector<8x100xf32>
    %148 = arith.maximumf %146, %147 : vector<8x100xf32>
    %cst_37 = arith.constant dense<0.000000e+00> : vector<8x128xf32>
    %149 = tpu.matmul %148, %7, %cst_37 {dimension_numbers = #tpu.dot_dimension_numbers<[1], [0], [0], [1], [0, 0, 1, 1], [], []>} : vector<8x100xf32>, vector<100x128xf32>, vector<8x128xf32> -> vector<8x128xf32>
    %150 = vector.broadcast %12 : vector<1x128xf32> to vector<8x128xf32>
    %151 = arith.addf %149, %150 : vector<8x128xf32>
    %c0_38 = arith.constant 0 : index
    %c0_39 = arith.constant 0 : index
    %152 = vector.load %arg2[%c0_38, %c0_39] : memref<8x128xf32, #tpu.memory_space<vmem>>, vector<8x128xf32>
    tpu.vector_store %arg2[%c0_38, %c0_39], %151 {strides = array<i32>} : memref<8x128xf32, #tpu.memory_space<vmem>>, vector<8x128xf32>,
    return
  }
}

</mosaic_0001>

<llo_original>
// kernel: mindgru_forward.1
$region0: #{mindgru_forward.1}
  #allocation0 [shape = 'u32[]', space=smem, size = 0x4, offset = 0x4, fixed_abs, tag = 'smem constant byte address 0x4 - core index']
  #allocation1 [shape = 'u32[144,128]{1,0:T(1,128)}', space=vmem, size = 0x12000, scoped, tag = 'internal scratch']
  %s0 = inlined_call_operand.vmem [shape: f32[40,20], index: 0, kind: input, shape index: {}]
  %s1 = inlined_call_operand.hbm [shape: f32[100,896], index: 1, kind: input, shape index: {}]
  %s2 = inlined_call_operand.vmem [shape: f32[8,128], index: 2, kind: output, shape index: {}]
  %s3 = sld [smem:[#allocation0]]
  $region22: #{mindgru_forward.1} parent=0
    _
  %s5 = ssub.s32 1, %s3
  %s6 = scalar_select 0, %s5, %s3
  $region1: #{mindgru_forward.1} parent=0
    #allocation2 [shape = 'u8[372736]{0}', space=vmem, size = 0x5b000, scoped, tag = 'input window, operand 1, single buffered']
    #allocation3 [shape = 's32[1]{0}', space=sflag, size = 0x4, scoped, tag = 'scoped memory for mindgru_forward.1']
    %7 = vsyncpa [#allocation3], 0
    // Predicated region
    $region2: #{mindgru_forward.1} parent=1 // pred_check
      _
    $region3: #{mindgru_forward.1} parent=1 // pred_check_branch
      %9 = sbr.rel (0) target = $region5
    $region4: #{mindgru_forward.1} parent=1 // pred_region
      _
    $region5: #{mindgru_forward.1} parent=1 // pred_fallthru
      _
    // Predicated region
    $region6: #{mindgru_forward.1} parent=1 // pred_check
      _
    $region7: #{mindgru_forward.1} parent=1 // pred_check_branch
      %11 = sbr.rel (0) target = $region9
    $region8: #{mindgru_forward.1} parent=1 // pred_region
      %s13 = ssub.s32 11648, 11648
      %14 = vsyncadd [#allocation3], %s13
      %s15 = sshll.u32 [#allocation2], 4
      %s16 = int_to_ptr.vmem [resolvable:$true] %s15
      %21 = dma.hbm_to_vmem [thread:$0]  %s1, 11648, %s16, [#allocation3], 896, 896, 56
    $region9: #{mindgru_forward.1} parent=1 // pred_fallthru
      _
    // Predicated region
    $region10: #{mindgru_forward.1} parent=1 // pred_check
      _
    $region11: #{mindgru_forward.1} parent=1 // pred_check_branch
      %23 = sbr.rel (0) target = $region13
    $region12: #{mindgru_forward.1} parent=1 // pred_region
      %24 = dma.done [#allocation3], 11648
    $region13: #{mindgru_forward.1} parent=1 // pred_fallthru
      _
    %v25 = vld [vmem:[%s0] sm:$0xff]
    %v26 = vld [vmem:[%s0 + $0x8] sm:$0xff]
    %v27 = vld [vmem:[%s0 + $0x10] sm:$0xff]
    %v28 = vld [vmem:[%s0 + $0x18] sm:$0xff]
    %v29 = vld [vmem:[%s0 + $0x20] sm:$0xff]
    %v30 = vld [vmem:[#allocation2] sm:$0xff]
    %v31 = vld [vmem:[#allocation2 + $0x38] sm:$0xff]
    %v32 = vld [vmem:[#allocation2 + $0x70] sm:$0xf]
    %v33 = vld [vmem:[#allocation2 + $0x8] sm:$0xff]
    %v34 = vld [vmem:[#allocation2 + $0x40] sm:$0xff]
    %v35 = vld [vmem:[#allocation2 + $0x78] sm:$0xf]
    %v36 = vld [vmem:[#allocation2 + $0x10] sm:$0xff]
    %v37 = vld [vmem:[#allocation2 + $0x48] sm:$0xff]
    %v38 = vld [vmem:[#allocation2 + $0x80] sm:$0xf]
    %v39 = vld [vmem:[#allocation2 + $0x18] sm:$0xff]
    %v40 = vld [vmem:[#allocation2 + $0x50] sm:$0xff]
    %v41 = vld [vmem:[#allocation2 + $0x88] sm:$0xf]
    %v42 = vld [vmem:[#allocation2 + $0x20] sm:$0xff]
    %v43 = vld [vmem:[#allocation2 + $0x58] sm:$0xff]
    %v44 = vld [vmem:[#allocation2 + $0x90] sm:$0xf]
    %v45 = vld [vmem:[#allocation2 + $0x28] sm:$0xff]
    %v46 = vld [vmem:[#allocation2 + $0x60] sm:$0xff]
    %v47 = vld [vmem:[#allocation2 + $0x98] sm:$0xff]
    %v48 = vld [vmem:[#allocation2 + $0xd0] sm:$0xff]
    %v49 = vld [vmem:[#allocation2 + $0x108] sm:$0xff]
    %v50 = vld [vmem:[#allocation2 + $0x140] sm:$0xff]
    %v51 = vld [vmem:[#allocation2 + $0x178] sm:$0xff]
    %v52 = vld [vmem:[#allocation2 + $0x1b0] sm:$0xff]
    %v53 = vld [vmem:[#allocation2 + $0x1e8] sm:$0xff]
    %v54 = vld [vmem:[#allocation2 + $0x220] sm:$0xff]
    %v55 = vld [vmem:[#allocation2 + $0x258] sm:$0xff]
    %v56 = vld [vmem:[#allocation2 + $0x290] sm:$0xff]
    %v57 = vld [vmem:[#allocation2 + $0x2c8] sm:$0xf]
    %v58 = vld [vmem:[#allocation2 + $0xa8] ss:$0 sm:$0xff]
    %v59 = vld [vmem:[#allocation2 + $0xb0] ss:$0 sm:$0xff]
    %v60 = vld [vmem:[#allocation2 + $0xb8] ss:$0 sm:$0xff]
    %v61 = vld [vmem:[#allocation2 + $0xc0] ss:$0 sm:$0xff]
    %v62 = vld [vmem:[#allocation2 + $0xd8] ss:$0 sm:$0xff]
    %vm63 = vcmask 162816
    %v65 = vsel %vm63, %v25, 0
    %v68 = vsel %vm63, %v26, 0
    %v71 = vsel %vm63, %v27, 0
    %v74 = vsel %vm63, %v28, 0
    %v77 = vsel %vm63, %v29, 0
    %vm79 = vcmask 1043456
    %v81 = vsel %vm79, %v32, 0
    %83 = vmatprep.subr.mxu0 0.0
    %84 = vmatpush1.msra.mxu0 %v30
    %85 = vmatprep.subr.mxu0 0.0
    %86 = vmatpush1.msra.mxu0 %v31
    %87 = vmatprep.subr.mxu0 0.0
    %88 = vmatpush1.msra.mxu0 %v81
    %89 = vmatprep.subr.mxu0 0.0
    %90 = vmatpush1.msra.mxu0 0.0
    %91 = vmatprep.subr.mxu0 0.0
    %92 = vmatpush1.msra.mxu0 0.0
    %93 = vmatprep.subr.mxu0 0.0
    %94 = vmatpush1.msra.mxu0 0.0
    %95 = vmatprep.subr.mxu0 0.0
    %96 = vmatpush1.msra.mxu0 0.0
    %97 = vmatprep.subr.mxu0 0.0
    %98 = vmatpush1.msra.mxu0 0.0
    %99 = vmatprep.subr.mxu0 0.0
    %100 = vmatpush1.msra.mxu0 0.0
    %101 = vmatprep.subr.mxu0 0.0
    %102 = vmatpush1.msra.mxu0 0.0
    %103 = vmatprep.subr.mxu0 0.0
    %104 = vmatpush1.msra.mxu0 0.0
    %105 = vmatprep.subr.mxu0 0.0
    %106 = vmatpush1.msra.mxu0 0.0
    %107 = vmatprep.subr.mxu0 0.0
    %108 = vmatpush1.msra.mxu0 0.0
    %109 = vmatprep.subr.mxu0 0.0
    %110 = vmatpush1.msra.mxu0 0.0
    %111 = vmatprep.subr.mxu0 0.0
    %112 = vmatpush1.msra.mxu0 0.0
    %113 = vmatprep.subr.mxu0 0.0
    %114 = vmatpush1.msra.mxu0 0.0
    %115 = vmatprep.subr.mxu0 0.0
    %116 = vmatpush1.msra.mxu0 0.0
    %117 = vmatprep.subr.mxu0 0.0
    %118 = vmatpush1.msra.mxu0 0.0
    %119 = vmatprep.subr.mxu0 0.0
    %120 = vmatpush1.msra.mxu0 0.0
    %121 = vmatprep.subr.mxu0 0.0
    %122 = vmatpush1.msra.mxu0 0.0
    %123 = vmatprep.subr.mxu0 0.0
    %124 = vmatpush1.msra.mxu0 0.0
    %125 = vmatprep.subr.mxu0 0.0
    %126 = vmatpush1.msra.mxu0 0.0
    %127 = vmatprep.subr.mxu0 0.0
    %128 = vmatpush1.msra.mxu0 0.0
    %129 = vmatprep.subr.mxu0 0.0
    %130 = vmatpush1.msra.mxu0 0.0
    %131 = vmatprep.subr.mxu0 0.0
    %132 = vmatpush1.msra.mxu0 0.0
    %133 = vmatprep.subr.mxu0 0.0
    %134 = vmatpush1.msra.mxu0 0.0
    %135 = vmatprep.subr.mxu0 0.0
    %136 = vmatpush1.msra.mxu0 0.0
    %137 = vmatprep.subr.mxu0 0.0
    %138 = vmatpush1.msra.mxu0 0.0
    %139 = vmatprep.subr.mxu0 0.0
    %140 = vmatpush1.msra.mxu0 0.0
    %141 = vmatprep.subr.mxu0 0.0
    %142 = vmatpush1.msra.mxu0 0.0
    %143 = vmatprep.subr.mxu0 0.0
    %144 = vmatpush1.msra.mxu0 0.0
    %145 = vmatprep.subr.mxu0 0.0
    %146 = vmatpush1.msra.mxu0 0.0
    %147 = vmatprep.mubr.f32.mxu0 0.0
    %148 = vmatmul.mubr.f32.gmra.mrb[0].mxu0 %v65
    %v149 = vpop.f32.mrb[0].mxu0
    %v150 = vadd.f32 %v58, %v149
    %v151 = vpop.f32.mrb[0].mxu0
    %152 = vmatprep.mubr.f32.mxu0 0.0
    %153 = vmatmul.mubr.f32.gmra.mrb[0].mxu0 %v68
    %v154 = vpop.f32.mrb[0].mxu0
    %v155 = vadd.f32 %v58, %v154
    %v156 = vpop.f32.mrb[0].mxu0
    %157 = vmatprep.mubr.f32.mxu0 0.0
    %158 = vmatmul.mubr.f32.gmra.mrb[0].mxu0 %v71
    %v159 = vpop.f32.mrb[0].mxu0
    %v160 = vadd.f32 %v58, %v159
    %v161 = vpop.f32.mrb[0].mxu0
    %162 = vmatprep.mubr.f32.mxu0 0.0
    %163 = vmatmul.mubr.f32.gmra.mrb[0].mxu0 %v74
    %v164 = vpop.f32.mrb[0].mxu0
    %v165 = vadd.f32 %v58, %v164
    %v166 = vpop.f32.mrb[0].mxu0
    %167 = vmatprep.mubr.f32.mxu0 0.0
    %168 = vmatmul.mubr.f32.gmra.mrb[0].mxu0 %v77
    %v169 = vpop.f32.mrb[0].mxu0
    %v170 = vadd.f32 %v58, %v169
    %v171 = vpop.f32.mrb[0].mxu0
    %172 = vdwg.mxu0
    %v173 = vmax.f32 %v150, 0.0
    %v174 = vmax.f32 %v155, 0.0
    %v175 = vmax.f32 %v160, 0.0
    %v176 = vmax.f32 %v165, 0.0
    %v177 = vmax.f32 %v170, 0.0
    %v179 = vsel %vm63, %v173, 0
    %v182 = vsel %vm63, %v174, 0
    %v185 = vsel %vm63, %v175, 0
    %v188 = vsel %vm63, %v176, 0
    %v191 = vsel %vm63, %v177, 0
    %v194 = vsel %vm79, %v35, 0
    %196 = vmatprep.subr.mxu0 0.0
    %197 = vmatpush1.msra.mxu0 %v33
    %198 = vmatprep.subr.mxu0 0.0
    %199 = vmatpush1.msra.mxu0 %v34
    %200 = vmatprep.subr.mxu0 0.0
    %201 = vmatpush1.msra.mxu0 %v194
    %202 = vmatprep.subr.mxu0 0.0
    %203 = vmatpush1.msra.mxu0 0.0
    %204 = vmatprep.subr.mxu0 0.0
    %205 = vmatpush1.msra.mxu0 0.0
    %206 = vmatprep.subr.mxu0 0.0
    %207 = vmatpush1.msra.mxu0 0.0
    %208 = vmatprep.subr.mxu0 0.0
    %209 = vmatpush1.msra.mxu0 0.0
    %210 = vmatprep.subr.mxu0 0.0
    %211 = vmatpush1.msra.mxu0 0.0
    %212 = vmatprep.subr.mxu0 0.0
    %213 = vmatpush1.msra.mxu0 0.0
    %214 = vmatprep.subr.mxu0 0.0
    %215 = vmatpush1.msra.mxu0 0.0
    %216 = vmatprep.subr.mxu0 0.0
    %217 = vmatpush1.msra.mxu0 0.0
    %218 = vmatprep.subr.mxu0 0.0
    %219 = vmatpush1.msra.mxu0 0.0
    %220 = vmatprep.subr.mxu0 0.0
    %221 = vmatpush1.msra.mxu0 0.0
    %222 = vmatprep.subr.mxu0 0.0
    %223 = vmatpush1.msra.mxu0 0.0
    %224 = vmatprep.subr.mxu0 0.0
    %225 = vmatpush1.msra.mxu0 0.0
    %226 = vmatprep.subr.mxu0 0.0
    %227 = vmatpush1.msra.mxu0 0.0
    %228 = vmatprep.subr.mxu0 0.0
    %229 = vmatpush1.msra.mxu0 0.0
    %230 = vmatprep.subr.mxu0 0.0
    %231 = vmatpush1.msra.mxu0 0.0
    %232 = vmatprep.subr.mxu0 0.0
    %233 = vmatpush1.msra.mxu0 0.0
    %234 = vmatprep.subr.mxu0 0.0
    %235 = vmatpush1.msra.mxu0 0.0
    %236 = vmatprep.subr.mxu0 0.0
    %237 = vmatpush1.msra.mxu0 0.0
    %238 = vmatprep.subr.mxu0 0.0
    %239 = vmatpush1.msra.mxu0 0.0
    %240 = vmatprep.subr.mxu0 0.0
    %241 = vmatpush1.msra.mxu0 0.0
    %242 = vmatprep.subr.mxu0 0.0
    %243 = vmatpush1.msra.mxu0 0.0
    %244 = vmatprep.subr.mxu0 0.0
    %245 = vmatpush1.msra.mxu0 0.0
    %246 = vmatprep.subr.mxu0 0.0
    %247 = vmatpush1.msra.mxu0 0.0
    %248 = vmatprep.subr.mxu0 0.0
    %249 = vmatpush1.msra.mxu0 0.0
    %250 = vmatprep.subr.mxu0 0.0
    %251 = vmatpush1.msra.mxu0 0.0
    %252 = vmatprep.subr.mxu0 0.0
    %253 = vmatpush1.msra.mxu0 0.0
    %254 = vmatprep.subr.mxu0 0.0
    %255 = vmatpush1.msra.mxu0 0.0
    %256 = vmatprep.subr.mxu0 0.0
    %257 = vmatpush1.msra.mxu0 0.0
    %258 = vmatprep.subr.mxu0 0.0
    %259 = vmatpush1.msra.mxu0 0.0
    %260 = vmatprep.mubr.f32.mxu0 0.0
    %261 = vmatmul.mubr.f32.gmra.mrb[0].mxu0 %v179
    %v262 = vpop.f32.mrb[0].mxu0
    %v263 = vadd.f32 %v59, %v262
    %v264 = vpop.f32.mrb[0].mxu0
    %265 = vmatprep.mubr.f32.mxu0 0.0
    %266 = vmatmul.mubr.f32.gmra.mrb[0].mxu0 %v182
    %v267 = vpop.f32.mrb[0].mxu0
    %v268 = vadd.f32 %v59, %v267
    %v269 = vpop.f32.mrb[0].mxu0
    %270 = vmatprep.mubr.f32.mxu0 0.0
    %271 = vmatmul.mubr.f32.gmra.mrb[0].mxu0 %v185
    %v272 = vpop.f32.mrb[0].mxu0
    %v273 = vadd.f32 %v59, %v272
    %v274 = vpop.f32.mrb[0].mxu0
    %275 = vmatprep.mubr.f32.mxu0 0.0
    %276 = vmatmul.mubr.f32.gmra.mrb[0].mxu0 %v188
    %v277 = vpop.f32.mrb[0].mxu0
    %v278 = vadd.f32 %v59, %v277
    %v279 = vpop.f32.mrb[0].mxu0
    %280 = vmatprep.mubr.f32.mxu0 0.0
    %281 = vmatmul.mubr.f32.gmra.mrb[0].mxu0 %v191
    %v282 = vpop.f32.mrb[0].mxu0
    %v283 = vadd.f32 %v59, %v282
    %v284 = vpop.f32.mrb[0].mxu0
    %285 = vdwg.mxu0
    %v287 = vsel %vm63, 0.0, 0
    %v290 = vsel %vm79, %v38, 0
    %292 = vmatprep.subr.mxu0 0.0
    %293 = vmatpush1.msra.mxu0 %v36
    %294 = vmatprep.subr.mxu0 0.0
    %295 = vmatpush1.msra.mxu0 %v37
    %296 = vmatprep.subr.mxu0 0.0
    %297 = vmatpush1.msra.mxu0 %v290
    %298 = vmatprep.subr.mxu0 0.0
    %299 = vmatpush1.msra.mxu0 0.0
    %300 = vmatprep.subr.mxu0 0.0
    %301 = vmatpush1.msra.mxu0 0.0
    %302 = vmatprep.subr.mxu0 0.0
    %303 = vmatpush1.msra.mxu0 0.0
    %304 = vmatprep.subr.mxu0 0.0
    %305 = vmatpush1.msra.mxu0 0.0
    %306 = vmatprep.subr.mxu0 0.0
    %307 = vmatpush1.msra.mxu0 0.0
    %308 = vmatprep.subr.mxu0 0.0
    %309 = vmatpush1.msra.mxu0 0.0
    %310 = vmatprep.subr.mxu0 0.0
    %311 = vmatpush1.msra.mxu0 0.0
    %312 = vmatprep.subr.mxu0 0.0
    %313 = vmatpush1.msra.mxu0 0.0
    %314 = vmatprep.subr.mxu0 0.0
    %315 = vmatpush1.msra.mxu0 0.0
    %316 = vmatprep.subr.mxu0 0.0
    %317 = vmatpush1.msra.mxu0 0.0
    %318 = vmatprep.subr.mxu0 0.0
    %319 = vmatpush1.msra.mxu0 0.0
    %320 = vmatprep.subr.mxu0 0.0
    %321 = vmatpush1.msra.mxu0 0.0
    %322 = vmatprep.subr.mxu0 0.0
    %323 = vmatpush1.msra.mxu0 0.0
    %324 = vmatprep.subr.mxu0 0.0
    %325 = vmatpush1.msra.mxu0 0.0
    %326 = vmatprep.subr.mxu0 0.0
    %327 = vmatpush1.msra.mxu0 0.0
    %328 = vmatprep.subr.mxu0 0.0
    %329 = vmatpush1.msra.mxu0 0.0
    %330 = vmatprep.subr.mxu0 0.0
    %331 = vmatpush1.msra.mxu0 0.0
    %332 = vmatprep.subr.mxu0 0.0
    %333 = vmatpush1.msra.mxu0 0.0
    %334 = vmatprep.subr.mxu0 0.0
    %335 = vmatpush1.msra.mxu0 0.0
    %336 = vmatprep.subr.mxu0 0.0
    %337 = vmatpush1.msra.mxu0 0.0
    %338 = vmatprep.subr.mxu0 0.0
    %339 = vmatpush1.msra.mxu0 0.0
    %340 = vmatprep.subr.mxu0 0.0
    %341 = vmatpush1.msra.mxu0 0.0
    %342 = vmatprep.subr.mxu0 0.0
    %343 = vmatpush1.msra.mxu0 0.0
    %344 = vmatprep.subr.mxu0 0.0
    %345 = vmatpush1.msra.mxu0 0.0
    %346 = vmatprep.subr.mxu0 0.0
    %347 = vmatpush1.msra.mxu0 0.0
    %348 = vmatprep.subr.mxu0 0.0
    %349 = vmatpush1.msra.mxu0 0.0
    %350 = vmatprep.subr.mxu0 0.0
    %351 = vmatpush1.msra.mxu0 0.0
    %352 = vmatprep.subr.mxu0 0.0
    %353 = vmatpush1.msra.mxu0 0.0
    %354 = vmatprep.subr.mxu0 0.0
    %355 = vmatpush1.msra.mxu0 0.0
    %356 = vmatprep.mubr.f32.mxu0 0.0
    %357 = vmatmul.mubr.f32.gmra.mrb[0].mxu0 %v287
    %v358 = vpop.f32.mrb[0].mxu0
    %v359 = vadd.f32 0.0, %v358
    %v360 = vpop.f32.mrb[0].mxu0
    %361 = vdwg.mxu0
    %v362 = vadd.f32 %v263, %v359
    %v363 = vxor.u32 %v362, 2147483648
    %v364 = vmul.f32 %v363, 1.442695
    %v365 = vpow.pop %v364
    %v366 = vadd.f32 %v365, 1.0
    %v367 = vrcp.pop %v366
    %v368 = vmul.f32 1.0, %v367
    %370 = vrot.lane.b32.xlu0 %v60, 40
    %v371 = vpop.permute.xlu0 %370
    %v373 = vadd.f32 %v359, %v371
    %375 = vrot.lane.b32.xlu0 %v373, 88
    %v376 = vpop.permute.xlu0 %375
    %v378 = vmul.f32 %v368, %v376
    %380 = vrot.lane.b32.xlu0 %v378, 40
    %v381 = vpop.permute.xlu0 %380
    %v383 = vadd.f32 %v263, %v381
    %v384 = vtanh.pop %v383
    %v385 = vsub.f32 1.0, %v368
    %387 = vrot.lane.b32.xlu0 %v384, 108
    %v388 = vpop.permute.xlu0 %387
    %v390 = vmul.f32 %v385, %v388
    %v391 = vmul.f32 %v368, 0.0
    %v392 = vadd.f32 %v390, %v391
    %394 = vrot.lane.b32.xlu0 %v392, 108
    %v395 = vpop.permute.xlu0 %394
    %v396 = vsel %vm63, %v395, 0
    %398 = vmatprep.subr.mxu0 0.0
    %399 = vmatpush1.msra.mxu0 %v36
    %400 = vmatprep.subr.mxu0 0.0
    %401 = vmatpush1.msra.mxu0 %v37
    %402 = vmatprep.subr.mxu0 0.0
    %403 = vmatpush1.msra.mxu0 %v290
    %404 = vmatprep.subr.mxu0 0.0
    %405 = vmatpush1.msra.mxu0 0.0
    %406 = vmatprep.subr.mxu0 0.0
    %407 = vmatpush1.msra.mxu0 0.0
    %408 = vmatprep.subr.mxu0 0.0
    %409 = vmatpush1.msra.mxu0 0.0
    %410 = vmatprep.subr.mxu0 0.0
    %411 = vmatpush1.msra.mxu0 0.0
    %412 = vmatprep.subr.mxu0 0.0
    %413 = vmatpush1.msra.mxu0 0.0
    %414 = vmatprep.subr.mxu0 0.0
    %415 = vmatpush1.msra.mxu0 0.0
    %416 = vmatprep.subr.mxu0 0.0
    %417 = vmatpush1.msra.mxu0 0.0
    %418 = vmatprep.subr.mxu0 0.0
    %419 = vmatpush1.msra.mxu0 0.0
    %420 = vmatprep.subr.mxu0 0.0
    %421 = vmatpush1.msra.mxu0 0.0
    %422 = vmatprep.subr.mxu0 0.0
    %423 = vmatpush1.msra.mxu0 0.0
    %424 = vmatprep.subr.mxu0 0.0
    %425 = vmatpush1.msra.mxu0 0.0
    %426 = vmatprep.subr.mxu0 0.0
    %427 = vmatpush1.msra.mxu0 0.0
    %428 = vmatprep.subr.mxu0 0.0
    %429 = vmatpush1.msra.mxu0 0.0
    %430 = vmatprep.subr.mxu0 0.0
    %431 = vmatpush1.msra.mxu0 0.0
    %432 = vmatprep.subr.mxu0 0.0
    %433 = vmatpush1.msra.mxu0 0.0
    %434 = vmatprep.subr.mxu0 0.0
    %435 = vmatpush1.msra.mxu0 0.0
    %436 = vmatprep.subr.mxu0 0.0
    %437 = vmatpush1.msra.mxu0 0.0
    %438 = vmatprep.subr.mxu0 0.0
    %439 = vmatpush1.msra.mxu0 0.0
    %440 = vmatprep.subr.mxu0 0.0
    %441 = vmatpush1.msra.mxu0 0.0
    %442 = vmatprep.subr.mxu0 0.0
    %443 = vmatpush1.msra.mxu0 0.0
    %444 = vmatprep.subr.mxu0 0.0
    %445 = vmatpush1.msra.mxu0 0.0
    %446 = vmatprep.subr.mxu0 0.0
    %447 = vmatpush1.msra.mxu0 0.0
    %448 = vmatprep.subr.mxu0 0.0
    %449 = vmatpush1.msra.mxu0 0.0
    %450 = vmatprep.subr.mxu0 0.0
    %451 = vmatpush1.msra.mxu0 0.0
    %452 = vmatprep.subr.mxu0 0.0
    %453 = vmatpush1.msra.mxu0 0.0
    %454 = vmatprep.subr.mxu0 0.0
    %455 = vmatpush1.msra.mxu0 0.0
    %456 = vmatprep.subr.mxu0 0.0
    %457 = vmatpush1.msra.mxu0 0.0
    %458 = vmatprep.subr.mxu0 0.0
    %459 = vmatpush1.msra.mxu0 0.0
    %460 = vmatprep.subr.mxu0 0.0
    %461 = vmatpush1.msra.mxu0 0.0
    %462 = vmatprep.mubr.f32.mxu0 0.0
    %463 = vmatmul.mubr.f32.gmra.mrb[0].mxu0 %v396
    %v464 = vpop.f32.mrb[0].mxu0
    %v465 = vadd.f32 0.0, %v464
    %v466 = vpop.f32.mrb[0].mxu0
    %467 = vdwg.mxu0
    %v468 = vadd.f32 %v268, %v465
    %v469 = vxor.u32 %v468, 2147483648
    %v470 = vmul.f32 %v469, 1.442695
    %v471 = vpow.pop %v470
    %v472 = vadd.f32 %v471, 1.0
    %v473 = vrcp.pop %v472
    %v474 = vmul.f32 1.0, %v473
    %v475 = vadd.f32 %v465, %v371
    %477 = vrot.lane.b32.xlu0 %v475, 88
    %v478 = vpop.permute.xlu0 %477
    %v480 = vmul.f32 %v474, %v478
    %482 = vrot.lane.b32.xlu0 %v480, 40
    %v483 = vpop.permute.xlu0 %482
    %v485 = vadd.f32 %v268, %v483
    %v486 = vtanh.pop %v485
    %v487 = vsub.f32 1.0, %v474
    %489 = vrot.lane.b32.xlu0 %v486, 108
    %v490 = vpop.permute.xlu0 %489
    %v492 = vmul.f32 %v487, %v490
    %v493 = vmul.f32 %v474, %v392
    %v494 = vadd.f32 %v492, %v493
    %496 = vrot.lane.b32.xlu0 %v494, 108
    %v497 = vpop.permute.xlu0 %496
    %v498 = vsel %vm63, %v497, 0
    %500 = vmatprep.subr.mxu0 0.0
    %501 = vmatpush1.msra.mxu0 %v36
    %502 = vmatprep.subr.mxu0 0.0
    %503 = vmatpush1.msra.mxu0 %v37
    %504 = vmatprep.subr.mxu0 0.0
    %505 = vmatpush1.msra.mxu0 %v290
    %506 = vmatprep.subr.mxu0 0.0
    %507 = vmatpush1.msra.mxu0 0.0
    %508 = vmatprep.subr.mxu0 0.0
    %509 = vmatpush1.msra.mxu0 0.0
    %510 = vmatprep.subr.mxu0 0.0
    %511 = vmatpush1.msra.mxu0 0.0
    %512 = vmatprep.subr.mxu0 0.0
    %513 = vmatpush1.msra.mxu0 0.0
    %514 = vmatprep.subr.mxu0 0.0
    %515 = vmatpush1.msra.mxu0 0.0
    %516 = vmatprep.subr.mxu0 0.0
    %517 = vmatpush1.msra.mxu0 0.0
    %518 = vmatprep.subr.mxu0 0.0
    %519 = vmatpush1.msra.mxu0 0.0
    %520 = vmatprep.subr.mxu0 0.0
    %521 = vmatpush1.msra.mxu0 0.0
    %522 = vmatprep.subr.mxu0 0.0
    %523 = vmatpush1.msra.mxu0 0.0
    %524 = vmatprep.subr.mxu0 0.0
    %525 = vmatpush1.msra.mxu0 0.0
    %526 = vmatprep.subr.mxu0 0.0
    %527 = vmatpush1.msra.mxu0 0.0
    %528 = vmatprep.subr.mxu0 0.0
    %529 = vmatpush1.msra.mxu0 0.0
    %530 = vmatprep.subr.mxu0 0.0
    %531 = vmatpush1.msra.mxu0 0.0
    %532 = vmatprep.subr.mxu0 0.0
    %533 = vmatpush1.msra.mxu0 0.0
    %534 = vmatprep.subr.mxu0 0.0
    %535 = vmatpush1.msra.mxu0 0.0
    %536 = vmatprep.subr.mxu0 0.0
    %537 = vmatpush1.msra.mxu0 0.0
    %538 = vmatprep.subr.mxu0 0.0
    %539 = vmatpush1.msra.mxu0 0.0
    %540 = vmatprep.subr.mxu0 0.0
    %541 = vmatpush1.msra.mxu0 0.0
    %542 = vmatprep.subr.mxu0 0.0
    %543 = vmatpush1.msra.mxu0 0.0
    %544 = vmatprep.subr.mxu0 0.0
    %545 = vmatpush1.msra.mxu0 0.0
    %546 = vmatprep.subr.mxu0 0.0
    %547 = vmatpush1.msra.mxu0 0.0
    %548 = vmatprep.subr.mxu0 0.0
    %549 = vmatpush1.msra.mxu0 0.0
    %550 = vmatprep.subr.mxu0 0.0
    %551 = vmatpush1.msra.mxu0 0.0
    %552 = vmatprep.subr.mxu0 0.0
    %553 = vmatpush1.msra.mxu0 0.0
    %554 = vmatprep.subr.mxu0 0.0
    %555 = vmatpush1.msra.mxu0 0.0
    %556 = vmatprep.subr.mxu0 0.0
    %557 = vmatpush1.msra.mxu0 0.0
    %558 = vmatprep.subr.mxu0 0.0
    %559 = vmatpush1.msra.mxu0 0.0
    %560 = vmatprep.subr.mxu0 0.0
    %561 = vmatpush1.msra.mxu0 0.0
    %562 = vmatprep.subr.mxu0 0.0
    %563 = vmatpush1.msra.mxu0 0.0
    %564 = vmatprep.mubr.f32.mxu0 0.0
    %565 = vmatmul.mubr.f32.gmra.mrb[0].mxu0 %v498
    %v566 = vpop.f32.mrb[0].mxu0
    %v567 = vadd.f32 0.0, %v566
    %v568 = vpop.f32.mrb[0].mxu0
    %569 = vdwg.mxu0
    %v570 = vadd.f32 %v273, %v567
    %v571 = vxor.u32 %v570, 2147483648
    %v572 = vmul.f32 %v571, 1.442695
    %v573 = vpow.pop %v572
    %v574 = vadd.f32 %v573, 1.0
    %v575 = vrcp.pop %v574
    %v576 = vmul.f32 1.0, %v575
    %v577 = vadd.f32 %v567, %v371
    %579 = vrot.lane.b32.xlu0 %v577, 88
    %v580 = vpop.permute.xlu0 %579
    %v582 = vmul.f32 %v576, %v580
    %584 = vrot.lane.b32.xlu0 %v582, 40
    %v585 = vpop.permute.xlu0 %584
    %v587 = vadd.f32 %v273, %v585
    %v588 = vtanh.pop %v587
    %v589 = vsub.f32 1.0, %v576
    %591 = vrot.lane.b32.xlu0 %v588, 108
    %v592 = vpop.permute.xlu0 %591
    %v594 = vmul.f32 %v589, %v592
    %v595 = vmul.f32 %v576, %v494
    %v596 = vadd.f32 %v594, %v595
    %598 = vrot.lane.b32.xlu0 %v596, 108
    %v599 = vpop.permute.xlu0 %598
    %v600 = vsel %vm63, %v599, 0
    %602 = vmatprep.subr.mxu0 0.0
    %603 = vmatpush1.msra.mxu0 %v36
    %604 = vmatprep.subr.mxu0 0.0
    %605 = vmatpush1.msra.mxu0 %v37
    %606 = vmatprep.subr.mxu0 0.0
    %607 = vmatpush1.msra.mxu0 %v290
    %608 = vmatprep.subr.mxu0 0.0
    %609 = vmatpush1.msra.mxu0 0.0
    %610 = vmatprep.subr.mxu0 0.0
    %611 = vmatpush1.msra.mxu0 0.0
    %612 = vmatprep.subr.mxu0 0.0
    %613 = vmatpush1.msra.mxu0 0.0
    %614 = vmatprep.subr.mxu0 0.0
    %615 = vmatpush1.msra.mxu0 0.0
    %616 = vmatprep.subr.mxu0 0.0
    %617 = vmatpush1.msra.mxu0 0.0
    %618 = vmatprep.subr.mxu0 0.0
    %619 = vmatpush1.msra.mxu0 0.0
    %620 = vmatprep.subr.mxu0 0.0
    %621 = vmatpush1.msra.mxu0 0.0
    %622 = vmatprep.subr.mxu0 0.0
    %623 = vmatpush1.msra.mxu0 0.0
    %624 = vmatprep.subr.mxu0 0.0
    %625 = vmatpush1.msra.mxu0 0.0
    %626 = vmatprep.subr.mxu0 0.0
    %627 = vmatpush1.msra.mxu0 0.0
    %628 = vmatprep.subr.mxu0 0.0
    %629 = vmatpush1.msra.mxu0 0.0
    %630 = vmatprep.subr.mxu0 0.0
    %631 = vmatpush1.msra.mxu0 0.0
    %632 = vmatprep.subr.mxu0 0.0
    %633 = vmatpush1.msra.mxu0 0.0
    %634 = vmatprep.subr.mxu0 0.0
    %635 = vmatpush1.msra.mxu0 0.0
    %636 = vmatprep.subr.mxu0 0.0
    %637 = vmatpush1.msra.mxu0 0.0
    %638 = vmatprep.subr.mxu0 0.0
    %639 = vmatpush1.msra.mxu0 0.0
    %640 = vmatprep.subr.mxu0 0.0
    %641 = vmatpush1.msra.mxu0 0.0
    %642 = vmatprep.subr.mxu0 0.0
    %643 = vmatpush1.msra.mxu0 0.0
    %644 = vmatprep.subr.mxu0 0.0
    %645 = vmatpush1.msra.mxu0 0.0
    %646 = vmatprep.subr.mxu0 0.0
    %647 = vmatpush1.msra.mxu0 0.0
    %648 = vmatprep.subr.mxu0 0.0
    %649 = vmatpush1.msra.mxu0 0.0
    %650 = vmatprep.subr.mxu0 0.0
    %651 = vmatpush1.msra.mxu0 0.0
    %652 = vmatprep.subr.mxu0 0.0
    %653 = vmatpush1.msra.mxu0 0.0
    %654 = vmatprep.subr.mxu0 0.0
    %655 = vmatpush1.msra.mxu0 0.0
    %656 = vmatprep.subr.mxu0 0.0
    %657 = vmatpush1.msra.mxu0 0.0
    %658 = vmatprep.subr.mxu0 0.0
    %659 = vmatpush1.msra.mxu0 0.0
    %660 = vmatprep.subr.mxu0 0.0
    %661 = vmatpush1.msra.mxu0 0.0
    %662 = vmatprep.subr.mxu0 0.0
    %663 = vmatpush1.msra.mxu0 0.0
    %664 = vmatprep.subr.mxu0 0.0
    %665 = vmatpush1.msra.mxu0 0.0
    %666 = vmatprep.mubr.f32.mxu0 0.0
    %667 = vmatmul.mubr.f32.gmra.mrb[0].mxu0 %v600
    %v668 = vpop.f32.mrb[0].mxu0
    %v669 = vadd.f32 0.0, %v668
    %v670 = vpop.f32.mrb[0].mxu0
    %671 = vdwg.mxu0
    %v672 = vadd.f32 %v278, %v669
    %v673 = vxor.u32 %v672, 2147483648
    %v674 = vmul.f32 %v673, 1.442695
    %v675 = vpow.pop %v674
    %v676 = vadd.f32 %v675, 1.0
    %v677 = vrcp.pop %v676
    %v678 = vmul.f32 1.0, %v677
    %v679 = vadd.f32 %v669, %v371
    %681 = vrot.lane.b32.xlu0 %v679, 88
    %v682 = vpop.permute.xlu0 %681
    %v684 = vmul.f32 %v678, %v682
    %686 = vrot.lane.b32.xlu0 %v684, 40
    %v687 = vpop.permute.xlu0 %686
    %v689 = vadd.f32 %v278, %v687
    %v690 = vtanh.pop %v689
    %v691 = vsub.f32 1.0, %v678
    %693 = vrot.lane.b32.xlu0 %v690, 108
    %v694 = vpop.permute.xlu0 %693
    %v696 = vmul.f32 %v691, %v694
    %v697 = vmul.f32 %v678, %v596
    %v698 = vadd.f32 %v696, %v697
    %700 = vrot.lane.b32.xlu0 %v698, 108
    %v701 = vpop.permute.xlu0 %700
    %v702 = vsel %vm63, %v701, 0
    %704 = vmatprep.subr.mxu0 0.0
    %705 = vmatpush1.msra.mxu0 %v36
    %706 = vmatprep.subr.mxu0 0.0
    %707 = vmatpush1.msra.mxu0 %v37
    %708 = vmatprep.subr.mxu0 0.0
    %709 = vmatpush1.msra.mxu0 %v290
    %710 = vmatprep.subr.mxu0 0.0
    %711 = vmatpush1.msra.mxu0 0.0
    %712 = vmatprep.subr.mxu0 0.0
    %713 = vmatpush1.msra.mxu0 0.0
    %714 = vmatprep.subr.mxu0 0.0
    %715 = vmatpush1.msra.mxu0 0.0
    %716 = vmatprep.subr.mxu0 0.0
    %717 = vmatpush1.msra.mxu0 0.0
    %718 = vmatprep.subr.mxu0 0.0
    %719 = vmatpush1.msra.mxu0 0.0
    %720 = vmatprep.subr.mxu0 0.0
    %721 = vmatpush1.msra.mxu0 0.0
    %722 = vmatprep.subr.mxu0 0.0
    %723 = vmatpush1.msra.mxu0 0.0
    %724 = vmatprep.subr.mxu0 0.0
    %725 = vmatpush1.msra.mxu0 0.0
    %726 = vmatprep.subr.mxu0 0.0
    %727 = vmatpush1.msra.mxu0 0.0
    %728 = vmatprep.subr.mxu0 0.0
    %729 = vmatpush1.msra.mxu0 0.0
    %730 = vmatprep.subr.mxu0 0.0
    %731 = vmatpush1.msra.mxu0 0.0
    %732 = vmatprep.subr.mxu0 0.0
    %733 = vmatpush1.msra.mxu0 0.0
    %734 = vmatprep.subr.mxu0 0.0
    %735 = vmatpush1.msra.mxu0 0.0
    %736 = vmatprep.subr.mxu0 0.0
    %737 = vmatpush1.msra.mxu0 0.0
    %738 = vmatprep.subr.mxu0 0.0
    %739 = vmatpush1.msra.mxu0 0.0
    %740 = vmatprep.subr.mxu0 0.0
    %741 = vmatpush1.msra.mxu0 0.0
    %742 = vmatprep.subr.mxu0 0.0
    %743 = vmatpush1.msra.mxu0 0.0
    %744 = vmatprep.subr.mxu0 0.0
    %745 = vmatpush1.msra.mxu0 0.0
    %746 = vmatprep.subr.mxu0 0.0
    %747 = vmatpush1.msra.mxu0 0.0
    %748 = vmatprep.subr.mxu0 0.0
    %749 = vmatpush1.msra.mxu0 0.0
    %750 = vmatprep.subr.mxu0 0.0
    %751 = vmatpush1.msra.mxu0 0.0
    %752 = vmatprep.subr.mxu0 0.0
    %753 = vmatpush1.msra.mxu0 0.0
    %754 = vmatprep.subr.mxu0 0.0
    %755 = vmatpush1.msra.mxu0 0.0
    %756 = vmatprep.subr.mxu0 0.0
    %757 = vmatpush1.msra.mxu0 0.0
    %758 = vmatprep.subr.mxu0 0.0
    %759 = vmatpush1.msra.mxu0 0.0
    %760 = vmatprep.subr.mxu0 0.0
    %761 = vmatpush1.msra.mxu0 0.0
    %762 = vmatprep.subr.mxu0 0.0
    %763 = vmatpush1.msra.mxu0 0.0
    %764 = vmatprep.subr.mxu0 0.0
    %765 = vmatpush1.msra.mxu0 0.0
    %766 = vmatprep.subr.mxu0 0.0
    %767 = vmatpush1.msra.mxu0 0.0
    %768 = vmatprep.mubr.f32.mxu0 0.0
    %769 = vmatmul.mubr.f32.gmra.mrb[0].mxu0 %v702
    %v770 = vpop.f32.mrb[0].mxu0
    %v771 = vadd.f32 0.0, %v770
    %v772 = vpop.f32.mrb[0].mxu0
    %773 = vdwg.mxu0
    %v774 = vadd.f32 %v283, %v771
    %v775 = vxor.u32 %v774, 2147483648
    %v776 = vmul.f32 %v775, 1.442695
    %v777 = vpow.pop %v776
    %v778 = vadd.f32 %v777, 1.0
    %v779 = vrcp.pop %v778
    %v780 = vmul.f32 1.0, %v779
    %v781 = vadd.f32 %v771, %v371
    %783 = vrot.lane.b32.xlu0 %v781, 88
    %v784 = vpop.permute.xlu0 %783
    %v786 = vmul.f32 %v780, %v784
    %788 = vrot.lane.b32.xlu0 %v786, 40
    %v789 = vpop.permute.xlu0 %788
    %v791 = vadd.f32 %v283, %v789
    %v792 = vtanh.pop %v791
    %v793 = vsub.f32 1.0, %v780
    %795 = vrot.lane.b32.xlu0 %v792, 108
    %v796 = vpop.permute.xlu0 %795
    %v798 = vmul.f32 %v793, %v796
    %v799 = vmul.f32 %v780, %v698
    %v800 = vadd.f32 %v798, %v799
    %v802 = vsel %vm79, %v44, 0
    %804 = vmatprep.subr.mxu0 0.0
    %805 = vmatpush1.msra.mxu0 %v42
    %806 = vmatprep.subr.mxu0 0.0
    %807 = vmatpush1.msra.mxu0 %v43
    %808 = vmatprep.subr.mxu0 0.0
    %809 = vmatpush1.msra.mxu0 %v802
    %810 = vmatprep.subr.mxu0 0.0
    %811 = vmatpush1.msra.mxu0 0.0
    %812 = vmatprep.subr.mxu0 0.0
    %813 = vmatpush1.msra.mxu0 0.0
    %814 = vmatprep.subr.mxu0 0.0
    %815 = vmatpush1.msra.mxu0 0.0
    %816 = vmatprep.subr.mxu0 0.0
    %817 = vmatpush1.msra.mxu0 0.0
    %818 = vmatprep.subr.mxu0 0.0
    %819 = vmatpush1.msra.mxu0 0.0
    %820 = vmatprep.subr.mxu0 0.0
    %821 = vmatpush1.msra.mxu0 0.0
    %822 = vmatprep.subr.mxu0 0.0
    %823 = vmatpush1.msra.mxu0 0.0
    %824 = vmatprep.subr.mxu0 0.0
    %825 = vmatpush1.msra.mxu0 0.0
    %826 = vmatprep.subr.mxu0 0.0
    %827 = vmatpush1.msra.mxu0 0.0
    %828 = vmatprep.subr.mxu0 0.0
    %829 = vmatpush1.msra.mxu0 0.0
    %830 = vmatprep.subr.mxu0 0.0
    %831 = vmatpush1.msra.mxu0 0.0
    %832 = vmatprep.subr.mxu0 0.0
    %833 = vmatpush1.msra.mxu0 0.0
    %834 = vmatprep.subr.mxu0 0.0
    %835 = vmatpush1.msra.mxu0 0.0
    %836 = vmatprep.subr.mxu0 0.0
    %837 = vmatpush1.msra.mxu0 0.0
    %838 = vmatprep.subr.mxu0 0.0
    %839 = vmatpush1.msra.mxu0 0.0
    %840 = vmatprep.subr.mxu0 0.0
    %841 = vmatpush1.msra.mxu0 0.0
    %842 = vmatprep.subr.mxu0 0.0
    %843 = vmatpush1.msra.mxu0 0.0
    %844 = vmatprep.subr.mxu0 0.0
    %845 = vmatpush1.msra.mxu0 0.0
    %846 = vmatprep.subr.mxu0 0.0
    %847 = vmatpush1.msra.mxu0 0.0
    %848 = vmatprep.subr.mxu0 0.0
    %849 = vmatpush1.msra.mxu0 0.0
    %850 = vmatprep.subr.mxu0 0.0
    %851 = vmatpush1.msra.mxu0 0.0
    %852 = vmatprep.subr.mxu0 0.0
    %853 = vmatpush1.msra.mxu0 0.0
    %854 = vmatprep.subr.mxu0 0.0
    %855 = vmatpush1.msra.mxu0 0.0
    %856 = vmatprep.subr.mxu0 0.0
    %857 = vmatpush1.msra.mxu0 0.0
    %858 = vmatprep.subr.mxu0 0.0
    %859 = vmatpush1.msra.mxu0 0.0
    %860 = vmatprep.subr.mxu0 0.0
    %861 = vmatpush1.msra.mxu0 0.0
    %862 = vmatprep.subr.mxu0 0.0
    %863 = vmatpush1.msra.mxu0 0.0
    %864 = vmatprep.subr.mxu0 0.0
    %865 = vmatpush1.msra.mxu0 0.0
    %866 = vmatprep.subr.mxu0 0.0
    %867 = vmatpush1.msra.mxu0 0.0
    %868 = vmatprep.mubr.f32.mxu0 0.0
    %869 = vmatmul.mubr.f32.gmra.mrb[0].mxu0 %v77
    %v870 = vpop.f32.mrb[0].mxu0
    %v871 = vadd.f32 0.0, %v870
    %v872 = vpop.f32.mrb[0].mxu0
    %873 = vdwg.mxu0
    %875 = vrot.lane.b32.xlu0 %v800, 108
    %v876 = vpop.permute.xlu0 %875
    %v877 = vsel %vm63, %v876, 0
    %v880 = vsel %vm79, %v41, 0
    %882 = vmatprep.subr.mxu0 0.0
    %883 = vmatpush1.msra.mxu0 %v39
    %884 = vmatprep.subr.mxu0 0.0
    %885 = vmatpush1.msra.mxu0 %v40
    %886 = vmatprep.subr.mxu0 0.0
    %887 = vmatpush1.msra.mxu0 %v880
    %888 = vmatprep.subr.mxu0 0.0
    %889 = vmatpush1.msra.mxu0 0.0
    %890 = vmatprep.subr.mxu0 0.0
    %891 = vmatpush1.msra.mxu0 0.0
    %892 = vmatprep.subr.mxu0 0.0
    %893 = vmatpush1.msra.mxu0 0.0
    %894 = vmatprep.subr.mxu0 0.0
    %895 = vmatpush1.msra.mxu0 0.0
    %896 = vmatprep.subr.mxu0 0.0
    %897 = vmatpush1.msra.mxu0 0.0
    %898 = vmatprep.subr.mxu0 0.0
    %899 = vmatpush1.msra.mxu0 0.0
    %900 = vmatprep.subr.mxu0 0.0
    %901 = vmatpush1.msra.mxu0 0.0
    %902 = vmatprep.subr.mxu0 0.0
    %903 = vmatpush1.msra.mxu0 0.0
    %904 = vmatprep.subr.mxu0 0.0
    %905 = vmatpush1.msra.mxu0 0.0
    %906 = vmatprep.subr.mxu0 0.0
    %907 = vmatpush1.msra.mxu0 0.0
    %908 = vmatprep.subr.mxu0 0.0
    %909 = vmatpush1.msra.mxu0 0.0
    %910 = vmatprep.subr.mxu0 0.0
    %911 = vmatpush1.msra.mxu0 0.0
    %912 = vmatprep.subr.mxu0 0.0
    %913 = vmatpush1.msra.mxu0 0.0
    %914 = vmatprep.subr.mxu0 0.0
    %915 = vmatpush1.msra.mxu0 0.0
    %916 = vmatprep.subr.mxu0 0.0
    %917 = vmatpush1.msra.mxu0 0.0
    %918 = vmatprep.subr.mxu0 0.0
    %919 = vmatpush1.msra.mxu0 0.0
    %920 = vmatprep.subr.mxu0 0.0
    %921 = vmatpush1.msra.mxu0 0.0
    %922 = vmatprep.subr.mxu0 0.0
    %923 = vmatpush1.msra.mxu0 0.0
    %924 = vmatprep.subr.mxu0 0.0
    %925 = vmatpush1.msra.mxu0 0.0
    %926 = vmatprep.subr.mxu0 0.0
    %927 = vmatpush1.msra.mxu0 0.0
    %928 = vmatprep.subr.mxu0 0.0
    %929 = vmatpush1.msra.mxu0 0.0
    %930 = vmatprep.subr.mxu0 0.0
    %931 = vmatpush1.msra.mxu0 0.0
    %932 = vmatprep.subr.mxu0 0.0
    %933 = vmatpush1.msra.mxu0 0.0
    %934 = vmatprep.subr.mxu0 0.0
    %935 = vmatpush1.msra.mxu0 0.0
    %936 = vmatprep.subr.mxu0 0.0
    %937 = vmatpush1.msra.mxu0 0.0
    %938 = vmatprep.subr.mxu0 0.0
    %939 = vmatpush1.msra.mxu0 0.0
    %940 = vmatprep.subr.mxu0 0.0
    %941 = vmatpush1.msra.mxu0 0.0
    %942 = vmatprep.subr.mxu0 0.0
    %943 = vmatpush1.msra.mxu0 0.0
    %944 = vmatprep.subr.mxu0 0.0
    %945 = vmatpush1.msra.mxu0 0.0
    %946 = vmatprep.mubr.f32.mxu0 0.0
    %947 = vmatmul.mubr.f32.gmra.mrb[0].mxu0 %v877
    %v948 = vpop.f32.mrb[0].mxu0
    %v949 = vadd.f32 %v871, %v948
    %v950 = vpop.f32.mrb[0].mxu0
    %951 = vdwg.mxu0
    %v952 = vadd.f32 %v949, %v61
    %v953 = vmax.f32 %v952, 0.0
    %vm954 = vcmask 818176
    %v956 = vsel %vm954, %v953, 0
    %v959 = vsel %vm79, %v57, 0
    %961 = vmatprep.subr.mxu0 0.0
    %962 = vmatpush1.msra.mxu0 %v45
    %963 = vmatprep.subr.mxu0 0.0
    %964 = vmatpush1.msra.mxu0 %v46
    %965 = vmatprep.subr.mxu0 0.0
    %966 = vmatpush1.msra.mxu0 %v47
    %967 = vmatprep.subr.mxu0 0.0
    %968 = vmatpush1.msra.mxu0 %v48
    %969 = vmatprep.subr.mxu0 0.0
    %970 = vmatpush1.msra.mxu0 %v49
    %971 = vmatprep.subr.mxu0 0.0
    %972 = vmatpush1.msra.mxu0 %v50
    %973 = vmatprep.subr.mxu0 0.0
    %974 = vmatpush1.msra.mxu0 %v51
    %975 = vmatprep.subr.mxu0 0.0
    %976 = vmatpush1.msra.mxu0 %v52
    %977 = vmatprep.subr.mxu0 0.0
    %978 = vmatpush1.msra.mxu0 %v53
    %979 = vmatprep.subr.mxu0 0.0
    %980 = vmatpush1.msra.mxu0 %v54
    %981 = vmatprep.subr.mxu0 0.0
    %982 = vmatpush1.msra.mxu0 %v55
    %983 = vmatprep.subr.mxu0 0.0
    %984 = vmatpush1.msra.mxu0 %v56
    %985 = vmatprep.subr.mxu0 0.0
    %986 = vmatpush1.msra.mxu0 %v959
    %987 = vmatprep.subr.mxu0 0.0
    %988 = vmatpush1.msra.mxu0 0.0
    %989 = vmatprep.subr.mxu0 0.0
    %990 = vmatpush1.msra.mxu0 0.0
    %991 = vmatprep.subr.mxu0 0.0
    %992 = vmatpush1.msra.mxu0 0.0
    %993 = vmatprep.subr.mxu0 0.0
    %994 = vmatpush1.msra.mxu0 0.0
    %995 = vmatprep.subr.mxu0 0.0
    %996 = vmatpush1.msra.mxu0 0.0
    %997 = vmatprep.subr.mxu0 0.0
    %998 = vmatpush1.msra.mxu0 0.0
    %999 = vmatprep.subr.mxu0 0.0
    %1000 = vmatpush1.msra.mxu0 0.0
    %1001 = vmatprep.subr.mxu0 0.0
    %1002 = vmatpush1.msra.mxu0 0.0
    %1003 = vmatprep.subr.mxu0 0.0
    %1004 = vmatpush1.msra.mxu0 0.0
    %1005 = vmatprep.subr.mxu0 0.0
    %1006 = vmatpush1.msra.mxu0 0.0
    %1007 = vmatprep.subr.mxu0 0.0
    %1008 = vmatpush1.msra.mxu0 0.0
    %1009 = vmatprep.subr.mxu0 0.0
    %1010 = vmatpush1.msra.mxu0 0.0
    %1011 = vmatprep.subr.mxu0 0.0
    %1012 = vmatpush1.msra.mxu0 0.0
    %1013 = vmatprep.subr.mxu0 0.0
    %1014 = vmatpush1.msra.mxu0 0.0
    %1015 = vmatprep.subr.mxu0 0.0
    %1016 = vmatpush1.msra.mxu0 0.0
    %1017 = vmatprep.subr.mxu0 0.0
    %1018 = vmatpush1.msra.mxu0 0.0
    %1019 = vmatprep.subr.mxu0 0.0
    %1020 = vmatpush1.msra.mxu0 0.0
    %1021 = vmatprep.subr.mxu0 0.0
    %1022 = vmatpush1.msra.mxu0 0.0
    %1023 = vmatprep.subr.mxu0 0.0
    %1024 = vmatpush1.msra.mxu0 0.0
    %1025 = vmatprep.mubr.f32.mxu0 0.0
    %1026 = vmatmul.mubr.f32.gmra.mrb[0].mxu0 %v956
    %v1027 = vpop.f32.mrb[0].mxu0
    %v1028 = vadd.f32 %v62, %v1027
    %v1029 = vpop.f32.mrb[0].mxu0
    %1030 = vdwg.mxu0
    %1031 = vst [vmem:[%s2] sm:$0xff] %v1028
    // Predicated region
    $region14: #{mindgru_forward.1} parent=1 // pred_check
      _
    $region15: #{mindgru_forward.1} parent=1 // pred_check_branch
      %1033 = sbr.rel (0) target = $region17
    $region16: #{mindgru_forward.1} parent=1 // pred_region
      _
    $region17: #{mindgru_forward.1} parent=1 // pred_fallthru
      _
    // Predicated region
    $region18: #{mindgru_forward.1} parent=1 // pred_check
      _
    $region19: #{mindgru_forward.1} parent=1 // pred_check_branch
      %1035 = sbr.rel (0) target = $region21
    $region20: #{mindgru_forward.1} parent=1 // pred_region
      _
    $region21: #{mindgru_forward.1} parent=1 // pred_fallthru
      _
    %1036 = vsyncpa [#allocation3], 1

</llo_original>
